<compile_context>
chip_gen: v7x
topology: tpu7x:2x2x1
jax: 0.10.0
libtpu: 0.0.40
codegen_flags: <defaults>
</compile_context>

<pallas_src>
import jax
import jax.numpy as jnp
from jax.experimental import pallas as pl
from jax.experimental.pallas import tpu as pltpu

INPUT_DIM = 16
HIDDEN_DIM = 32
BATCH = 256            # small example batch (splits 2x128 on v7x, 1 step elsewhere)


def mlp_kernel(x_ref, w1_ref, b1_ref, w2_ref, b2_ref, w3_ref, b3_ref, o_ref):
    # x tile (tile_b, D) arrives f32; cast to bf16 in-kernel (VPU, hidden under DMA).
    xb = x_ref[...].astype(jnp.bfloat16)

    # Layer 1: (H, D) . (tile_b, D)^T -> (H, tile_b).  Batch on lanes (full MXU width).
    h1 = jax.lax.dot_general(
        w1_ref[...], xb,
        dimension_numbers=(((1,), (1,)), ((), ())),
        preferred_element_type=jnp.float32)
    h1 = jnp.maximum(h1 + b1_ref[...], 0.0)          # bias (H,1) broadcasts over lanes

    # Layer 2: (H, H) @ (H, tile_b) -> (H, tile_b).
    h2 = jnp.dot(w2_ref[...], h1.astype(jnp.bfloat16),
                 preferred_element_type=jnp.float32)
    h2 = jnp.maximum(h2 + b2_ref[...], 0.0)

    # Head: (1, H) @ (H, tile_b) -> (1, tile_b) lane-dense output row.
    out = jnp.dot(w3_ref[...], h2.astype(jnp.bfloat16),
                  preferred_element_type=jnp.float32)
    o_ref[...] = (out + b3_ref[0]).astype(o_ref.dtype)


def _num_tensorcores() -> int:
    """2 on v7x-class chips (2 TCs/chip), else 1 (v5e/v6e)."""
    try:
        kind = jax.devices()[0].device_kind.lower()
    except Exception:
        return 1
    return 2 if ("v7" in kind or "tpu7" in kind) else 1


def feed_forward_nn(x, params):
    w1, b1, w2, b2, w3, b3 = params           # w1:(H,D) bf16, b1:(H,1) f32, ...
    B, D = x.shape
    H = w1.shape[0]

    # Grid: one step per TensorCore, no padding.  Single-TC chips -> grid=1
    # (block == full array so any B is legal); v7x -> grid=2 if it tiles cleanly.
    n_tc = _num_tensorcores()
    if n_tc > 1 and B % n_tc == 0 and (B // n_tc) % 128 == 0:
        num_tiles = n_tc
    else:
        num_tiles = 1
    tile_b = B // num_tiles

    flops = 2 * B * (D * H + H * H + H)
    bytes_accessed = (B * D * 4 + B * 4                 # x (f32 in) + out (f32)
                      + (D * H + H * H + H) * 2         # bf16 weights
                      + (2 * H + 1) * 4)                # f32 biases
    cost = pl.CostEstimate(flops=flops, transcendentals=0,
                           bytes_accessed=bytes_accessed)

    out_row = pl.pallas_call(
        mlp_kernel,
        out_shape=jax.ShapeDtypeStruct((1, B), jnp.float32),
        grid_spec=pltpu.PrefetchScalarGridSpec(
            num_scalar_prefetch=0,
            grid=(num_tiles,),
            in_specs=[
                pl.BlockSpec((tile_b, D), lambda i: (i, 0)),        # x tile, f32
                pl.BlockSpec((H, D), lambda i: (0, 0)),             # W1 (out,in) bf16
                pl.BlockSpec((H, 1), lambda i: (0, 0)),             # b1 f32 column
                pl.BlockSpec((H, H), lambda i: (0, 0)),             # W2 (out,in) bf16
                pl.BlockSpec((H, 1), lambda i: (0, 0)),             # b2 f32 column
                pl.BlockSpec((1, H), lambda i: (0, 0)),             # W3 (out,in) bf16
                pl.BlockSpec(memory_space=pltpu.MemorySpace.SMEM),  # b3 scalar
            ],
            out_specs=pl.BlockSpec((1, tile_b), lambda i: (0, i)),  # lane-dense row
        ),
        compiler_params=pltpu.CompilerParams(
            dimension_semantics=("parallel",)),
        cost_estimate=cost,
    )(x, w1, b1, w2, b2, w3, b3)

    # Match the nn.Module output shape (B, 1).  (If the call site can consume
    # (1, B) directly, drop this relayout.)
    return out_row.reshape(B, 1)


def init_params(key):
    """Deterministic init mimicking nn.Linear's U(-1/sqrt(fan_in), 1/sqrt(fan_in)).

    Weights are stored in PyTorch (out, in) layout as bf16 (MXU inputs);
    b1/b2 as (H, 1) fp32 columns (broadcast across batch lanes); b3 as (1,) fp32.
    """
    ks = jax.random.split(key, 6)

    def lin(kw, kb, fan_in, fan_out):
        bound = 1.0 / jnp.sqrt(fan_in)
        w = jax.random.uniform(kw, (fan_out, fan_in), jnp.float32, -bound, bound)
        b = jax.random.uniform(kb, (fan_out, 1), jnp.float32, -bound, bound)
        return w, b

    w1, b1 = lin(ks[0], ks[1], INPUT_DIM, HIDDEN_DIM)
    w2, b2 = lin(ks[2], ks[3], HIDDEN_DIM, HIDDEN_DIM)
    w3, b3 = lin(ks[4], ks[5], HIDDEN_DIM, 1)
    return (w1.astype(jnp.bfloat16), b1,
            w2.astype(jnp.bfloat16), b2,
            w3.astype(jnp.bfloat16), b3.reshape(1))


def reference_forward(x, params):
    """Pure-JAX reference mirroring the kernel's bf16-in / fp32-accumulate math."""
    w1, b1, w2, b2, w3, b3 = params
    xb = x.astype(jnp.bfloat16)
    h1 = jnp.maximum(
        jnp.dot(xb, w1.T, preferred_element_type=jnp.float32) + b1.T, 0.0)
    h2 = jnp.maximum(
        jnp.dot(h1.astype(jnp.bfloat16), w2.T,
                preferred_element_type=jnp.float32) + b2.T, 0.0)
    return jnp.dot(h2.astype(jnp.bfloat16), w3.T,
                   preferred_element_type=jnp.float32) + b3


if __name__ == "__main__":
    key = jax.random.PRNGKey(0)
    kx, kp = jax.random.split(key)
    x = jax.random.normal(kx, (BATCH, INPUT_DIM), jnp.float32)
    params = init_params(kp)

    out = jax.block_until_ready(feed_forward_nn(x, params))
    ref = reference_forward(x, params)

    assert out.shape == (BATCH, 1), out.shape
    max_err = jnp.max(jnp.abs(out - ref))
    assert jnp.allclose(out, ref, atol=1e-2, rtol=1e-2), f"max err {max_err}"
    print("KERNEL_OK")
</pallas_src>

<mosaic_0001>
module attributes {stable_mosaic.version = 11 : i64} {
  func.func @mlp_kernel(%arg0: i32, %arg1: memref<256x16xf32, #tpu.memory_space<vmem>>, %arg2: memref<32x16xbf16, #tpu.memory_space<vmem>>, %arg3: memref<32x1xf32, #tpu.memory_space<vmem>>, %arg4: memref<32x32xbf16, #tpu.memory_space<vmem>>, %arg5: memref<32x1xf32, #tpu.memory_space<vmem>>, %arg6: memref<1x32xbf16, #tpu.memory_space<vmem>>, %arg7: memref<1xf32, #tpu.memory_space<smem>>, %arg8: memref<1x256xf32, #tpu.memory_space<vmem>>) attributes {dimension_semantics = [#tpu.dimension_semantics<parallel>], iteration_bounds = array<i64: 1>, scalar_prefetch = 0 : i64, scratch_operands = 0 : i64, tpu.core_type = #tpu.core_type<tc>, window_params = [{transform_indices = @transform_0, window_bounds = array<i64: 256, 16>}, {pipeline_mode = #tpu.pipeline_mode<synchronous>, transform_indices = @transform_1, window_bounds = array<i64: 32, 16>}, {pipeline_mode = #tpu.pipeline_mode<synchronous>, transform_indices = @transform_2, window_bounds = array<i64: 32, 1>}, {pipeline_mode = #tpu.pipeline_mode<synchronous>, transform_indices = @transform_3, window_bounds = array<i64: 32, 32>}, {pipeline_mode = #tpu.pipeline_mode<synchronous>, transform_indices = @transform_4, window_bounds = array<i64: 32, 1>}, {pipeline_mode = #tpu.pipeline_mode<synchronous>, transform_indices = @transform_5, window_bounds = array<i64: 1, 32>}, {transform_indices = @transform_6, window_bounds = array<i64: 1>}, {transform_indices = @transform_7, window_bounds = array<i64: 1, 256>}]} {
    %c0 = arith.constant 0 : index
    %c0_0 = arith.constant 0 : index
    %0 = vector.load %arg1[%c0, %c0_0] : memref<256x16xf32, #tpu.memory_space<vmem>>, vector<256x16xf32>
    %1 = arith.truncf %0 : vector<256x16xf32> to vector<256x16xbf16>
    %c0_1 = arith.constant 0 : index
    %c0_2 = arith.constant 0 : index
    %2 = vector.load %arg2[%c0_1, %c0_2] : memref<32x16xbf16, #tpu.memory_space<vmem>>, vector<32x16xbf16>
    %cst = arith.constant dense<0.000000e+00> : vector<32x256xf32>
    %3 = tpu.matmul %2, %1, %cst {dimension_numbers = #tpu.dot_dimension_numbers<[1], [1], [0], [0], [0, 0, 1, 0], [], []>} : vector<32x16xbf16>, vector<256x16xbf16>, vector<32x256xf32> -> vector<32x256xf32>
    %c0_3 = arith.constant 0 : index
    %c0_4 = arith.constant 0 : index
    %4 = vector.load %arg3[%c0_3, %c0_4] : memref<32x1xf32, #tpu.memory_space<vmem>>, vector<32x1xf32>
    %5 = vector.broadcast %4 : vector<32x1xf32> to vector<32x256xf32>
    %6 = arith.addf %3, %5 : vector<32x256xf32>
    %cst_5 = arith.constant 0.000000e+00 : f32
    %7 = vector.broadcast %cst_5 : f32 to vector<32x256xf32>
    %8 = arith.maximumf %6, %7 : vector<32x256xf32>
    %c0_6 = arith.constant 0 : index
    %c0_7 = arith.constant 0 : index
    %9 = vector.load %arg4[%c0_6, %c0_7] : memref<32x32xbf16, #tpu.memory_space<vmem>>, vector<32x32xbf16>
    %10 = arith.truncf %8 : vector<32x256xf32> to vector<32x256xbf16>
    %cst_8 = arith.constant dense<0.000000e+00> : vector<32x256xf32>
    %11 = tpu.matmul %9, %10, %cst_8 {dimension_numbers = #tpu.dot_dimension_numbers<[1], [0], [0], [1], [0, 0, 1, 1], [], []>} : vector<32x32xbf16>, vector<32x256xbf16>, vector<32x256xf32> -> vector<32x256xf32>
    %c0_9 = arith.constant 0 : index
    %c0_10 = arith.constant 0 : index
    %12 = vector.load %arg5[%c0_9, %c0_10] : memref<32x1xf32, #tpu.memory_space<vmem>>, vector<32x1xf32>
    %13 = vector.broadcast %12 : vector<32x1xf32> to vector<32x256xf32>
    %14 = arith.addf %11, %13 : vector<32x256xf32>
    %cst_11 = arith.constant 0.000000e+00 : f32
    %15 = vector.broadcast %cst_11 : f32 to vector<32x256xf32>
    %16 = arith.maximumf %14, %15 : vector<32x256xf32>
    %c0_12 = arith.constant 0 : index
    %c0_13 = arith.constant 0 : index
    %17 = vector.load %arg6[%c0_12, %c0_13] : memref<1x32xbf16, #tpu.memory_space<vmem>>, vector<1x32xbf16>
    %18 = arith.truncf %16 : vector<32x256xf32> to vector<32x256xbf16>
    %cst_14 = arith.constant dense<0.000000e+00> : vector<1x256xf32>
    %19 = tpu.matmul %17, %18, %cst_14 {dimension_numbers = #tpu.dot_dimension_numbers<[1], [0], [0], [1], [0, 0, 1, 1], [], []>} : vector<1x32xbf16>, vector<32x256xbf16>, vector<1x256xf32> -> vector<1x256xf32>
    %c0_15 = arith.constant 0 : index
    %20 = memref.load %arg7[%c0_15] : memref<1xf32, #tpu.memory_space<smem>>
    %21 = vector.broadcast %20 : f32 to vector<1x256xf32>
    %22 = arith.addf %19, %21 : vector<1x256xf32>
    %c0_16 = arith.constant 0 : index
    %c0_17 = arith.constant 0 : index
    %23 = vector.load %arg8[%c0_16, %c0_17] : memref<1x256xf32, #tpu.memory_space<vmem>>, vector<1x256xf32>
    tpu.vector_store %arg8[%c0_16, %c0_17], %22 {strides = array<i32>} : memref<1x256xf32, #tpu.memory_space<vmem>>, vector<1x256xf32>,
    return
  }
  func.func @transform_0(%arg0: i32) -> (i32, i32) {
    %c0_i32 = arith.constant 0 : i32
    %c0_i32_0 = arith.constant 0 : i32
    return %arg0, %c0_i32 : i32, i32
  }
  func.func @transform_1(%arg0: i32) -> (i32, i32) {
    %c0_i32 = arith.constant 0 : i32
    %c0_i32_0 = arith.constant 0 : i32
    %c0_i32_1 = arith.constant 0 : i32
    return %c0_i32, %c0_i32_0 : i32, i32
  }
  func.func @transform_2(%arg0: i32) -> (i32, i32) {
    %c0_i32 = arith.constant 0 : i32
    %c0_i32_0 = arith.constant 0 : i32
    %c0_i32_1 = arith.constant 0 : i32
    return %c0_i32, %c0_i32_0 : i32, i32
  }
  func.func @transform_3(%arg0: i32) -> (i32, i32) {
    %c0_i32 = arith.constant 0 : i32
    %c0_i32_0 = arith.constant 0 : i32
    %c0_i32_1 = arith.constant 0 : i32
    return %c0_i32, %c0_i32_0 : i32, i32
  }
  func.func @transform_4(%arg0: i32) -> (i32, i32) {
    %c0_i32 = arith.constant 0 : i32
    %c0_i32_0 = arith.constant 0 : i32
    %c0_i32_1 = arith.constant 0 : i32
    return %c0_i32, %c0_i32_0 : i32, i32
  }
  func.func @transform_5(%arg0: i32) -> (i32, i32) {
    %c0_i32 = arith.constant 0 : i32
    %c0_i32_0 = arith.constant 0 : i32
    %c0_i32_1 = arith.constant 0 : i32
    return %c0_i32, %c0_i32_0 : i32, i32
  }
  func.func @transform_6(%arg0: i32) -> i32 {
    %c0_i32 = arith.constant 0 : i32
    %c0_i32_0 = arith.constant 0 : i32
    return %c0_i32 : i32
  }
  func.func @transform_7(%arg0: i32) -> (i32, i32) {
    %c0_i32 = arith.constant 0 : i32
    %c0_i32_0 = arith.constant 0 : i32
    return %c0_i32, %arg0 : i32, i32
  }
}

</mosaic_0001>

<llo_original>
// kernel: tpu_custom_call.1
$region0: #{tpu_custom_call.1}
  #allocation0 [shape = 'u32[]', space=smem, size = 0x4, offset = 0x4, fixed_abs, tag = 'smem constant byte address 0x4 - core index']
  #allocation1 [shape = 'u32[144,128]{1,0:T(1,128)}', space=vmem, size = 0x12000, scoped, tag = 'internal scratch']
  #allocation2 [shape = 'f32[1]{0:T(128)S(6)}', space=smem, size = 0x200, scoped, tag = 'scoped memory for tpu_custom_call.1']
  %s0 = inlined_call_operand.vmem [shape: f32[256,16], index: 0, kind: input, shape index: {}]
  %s1 = inlined_call_operand.vmem [shape: bf16[32,16], index: 1, kind: input, shape index: {}]
  %s2 = inlined_call_operand.vmem [shape: f32[32,1], index: 2, kind: input, shape index: {}]
  %s3 = inlined_call_operand.vmem [shape: bf16[32,32], index: 3, kind: input, shape index: {}]
  %s4 = inlined_call_operand.vmem [shape: f32[32,1], index: 4, kind: input, shape index: {}]
  %s5 = inlined_call_operand.vmem [shape: bf16[1,32], index: 5, kind: input, shape index: {}]
  %s6 = inlined_call_operand.<no memory space> [shape: f32[1], index: 6, kind: input, shape index: {}]
  %s7 = inlined_call_operand.hbm [shape: f32[1,256], index: 7, kind: output, shape index: {}]
  %s8 = sld [smem:[#allocation0]]
  $region38: #{tpu_custom_call.1} parent=0
    _
  %s10 = ssub.s32 1, %s8
  %s11 = scalar_select 0, %s10, %s8
  %12 = sst [smem:[#allocation2]] %s6
  $region1: #{tpu_custom_call.1} parent=0
    #allocation3 [shape = 'u8[1024]{0}', space=vmem, size = 0x400, scoped, tag = 'output window, operand 0, single buffered']
    #allocation4 [shape = 's32[1]{0}', space=sflag, size = 0x4, scoped, tag = 'scoped memory for tpu_custom_call.1']
    %13 = vsyncpa [#allocation4], 0
    // Predicated region
    $region2: #{tpu_custom_call.1} parent=1 // pred_check
      _
    $region3: #{tpu_custom_call.1} parent=1 // pred_check_branch
      %15 = sbr.rel (0) target = $region5
    $region4: #{tpu_custom_call.1} parent=1 // pred_region
      _
    $region5: #{tpu_custom_call.1} parent=1 // pred_fallthru
      _
    // Predicated region
    $region6: #{tpu_custom_call.1} parent=1 // pred_check
      _
    $region7: #{tpu_custom_call.1} parent=1 // pred_check_branch
      %17 = sbr.rel (0) target = $region9
    $region8: #{tpu_custom_call.1} parent=1 // pred_region
      _
    $region9: #{tpu_custom_call.1} parent=1 // pred_fallthru
      _
    // Predicated region
    $region10: #{tpu_custom_call.1} parent=1 // pred_check
      _
    $region11: #{tpu_custom_call.1} parent=1 // pred_check_branch
      %19 = sbr.rel (0) target = $region13
    $region12: #{tpu_custom_call.1} parent=1 // pred_region
      _
    $region13: #{tpu_custom_call.1} parent=1 // pred_fallthru
      _
    // Predicated region
    $region14: #{tpu_custom_call.1} parent=1 // pred_check
      _
    $region15: #{tpu_custom_call.1} parent=1 // pred_check_branch
      %21 = sbr.rel (0) target = $region17
    $region16: #{tpu_custom_call.1} parent=1 // pred_region
      _
    $region17: #{tpu_custom_call.1} parent=1 // pred_fallthru
      _
    // Predicated region
    $region18: #{tpu_custom_call.1} parent=1 // pred_check
      _
    $region19: #{tpu_custom_call.1} parent=1 // pred_check_branch
      %23 = sbr.rel (0) target = $region21
    $region20: #{tpu_custom_call.1} parent=1 // pred_region
      _
    $region21: #{tpu_custom_call.1} parent=1 // pred_fallthru
      _
    // Predicated region
    $region22: #{tpu_custom_call.1} parent=1 // pred_check
      _
    $region23: #{tpu_custom_call.1} parent=1 // pred_check_branch
      %25 = sbr.rel (0) target = $region25
    $region24: #{tpu_custom_call.1} parent=1 // pred_region
      _
    $region25: #{tpu_custom_call.1} parent=1 // pred_fallthru
      _
    // Predicated region
    $region26: #{tpu_custom_call.1} parent=1 // pred_check
      _
    $region27: #{tpu_custom_call.1} parent=1 // pred_check_branch
      %27 = sbr.rel (0) target = $region29
    $region28: #{tpu_custom_call.1} parent=1 // pred_region
      _
    $region29: #{tpu_custom_call.1} parent=1 // pred_fallthru
      _
    %v29 = vld [vmem:[%s0] sm:$0xff]
    %v30 = vld [vmem:[%s0 + $0x8] sm:$0xff]
    %v31 = vld [vmem:[%s0 + $0x10] sm:$0xff]
    %v32 = vld [vmem:[%s0 + $0x18] sm:$0xff]
    %v33 = vld [vmem:[%s0 + $0x20] sm:$0xff]
    %v34 = vld [vmem:[%s0 + $0x28] sm:$0xff]
    %v35 = vld [vmem:[%s0 + $0x30] sm:$0xff]
    %v36 = vld [vmem:[%s0 + $0x38] sm:$0xff]
    %v37 = vld [vmem:[%s0 + $0x40] sm:$0xff]
    %v38 = vld [vmem:[%s0 + $0x48] sm:$0xff]
    %v39 = vld [vmem:[%s0 + $0x50] sm:$0xff]
    %v40 = vld [vmem:[%s0 + $0x58] sm:$0xff]
    %v41 = vld [vmem:[%s0 + $0x60] sm:$0xff]
    %v42 = vld [vmem:[%s0 + $0x68] sm:$0xff]
    %v43 = vld [vmem:[%s0 + $0x70] sm:$0xff]
    %v44 = vld [vmem:[%s0 + $0x78] sm:$0xff]
    %v45 = vld [vmem:[%s0 + $0x80] sm:$0xff]
    %v46 = vld [vmem:[%s0 + $0x88] sm:$0xff]
    %v47 = vld [vmem:[%s0 + $0x90] sm:$0xff]
    %v48 = vld [vmem:[%s0 + $0x98] sm:$0xff]
    %v49 = vld [vmem:[%s0 + $0xa0] sm:$0xff]
    %v50 = vld [vmem:[%s0 + $0xa8] sm:$0xff]
    %v51 = vld [vmem:[%s0 + $0xb0] sm:$0xff]
    %v52 = vld [vmem:[%s0 + $0xb8] sm:$0xff]
    %v53 = vld [vmem:[%s0 + $0xc0] sm:$0xff]
    %v54 = vld [vmem:[%s0 + $0xc8] sm:$0xff]
    %v55 = vld [vmem:[%s0 + $0xd0] sm:$0xff]
    %v56 = vld [vmem:[%s0 + $0xd8] sm:$0xff]
    %v57 = vld [vmem:[%s0 + $0xe0] sm:$0xff]
    %v58 = vld [vmem:[%s0 + $0xe8] sm:$0xff]
    %v59 = vld [vmem:[%s0 + $0xf0] sm:$0xff]
    %v60 = vld [vmem:[%s0 + $0xf8] sm:$0xff]
    %v61 = vpack.c.bf16 %v30, %v29
    %v62 = vpack.c.bf16 %v32, %v31
    %v63 = vpack.c.bf16 %v34, %v33
    %v64 = vpack.c.bf16 %v36, %v35
    %v65 = vpack.c.bf16 %v38, %v37
    %v66 = vpack.c.bf16 %v40, %v39
    %v67 = vpack.c.bf16 %v42, %v41
    %v68 = vpack.c.bf16 %v44, %v43
    %v69 = vpack.c.bf16 %v46, %v45
    %v70 = vpack.c.bf16 %v48, %v47
    %v71 = vpack.c.bf16 %v50, %v49
    %v72 = vpack.c.bf16 %v52, %v51
    %v73 = vpack.c.bf16 %v54, %v53
    %v74 = vpack.c.bf16 %v56, %v55
    %v75 = vpack.c.bf16 %v58, %v57
    %v76 = vpack.c.bf16 %v60, %v59
    %v77 = vld [vmem:[%s1] sm:$0xf]
    %v78 = vld [vmem:[%s1 + $0x4] sm:$0xf]
    %v79 = vld [vmem:[%s1 + $0x8] sm:$0xf]
    %v80 = vld [vmem:[%s1 + $0xc] sm:$0xf]
    %v81 = vld [vmem:[%s2] sm:$0xff]
    %v82 = vld [vmem:[%s2 + $0x8] sm:$0xff]
    %v83 = vld [vmem:[%s2 + $0x10] sm:$0xff]
    %v84 = vld [vmem:[%s2 + $0x18] sm:$0xff]
    %86 = vset.pattern.permute.xlu0 0
    %87 = vperm.xlu0 %86, %v81
    %v88 = vpop.permute.xlu0 %87
    %91 = vset.pattern.permute.xlu0 0
    %92 = vperm.xlu0 %91, %v82
    %v93 = vpop.permute.xlu0 %92
    %96 = vset.pattern.permute.xlu0 0
    %97 = vperm.xlu0 %96, %v83
    %v98 = vpop.permute.xlu0 %97
    %101 = vset.pattern.permute.xlu0 0
    %102 = vperm.xlu0 %101, %v84
    %v103 = vpop.permute.xlu0 %102
    %v109 = vunpack.c.l.b16 %v77
    %v110 = vunpack.c.l.b16 %v78
    %v111 = vunpack.c.l.b16 %v79
    %v112 = vunpack.c.l.b16 %v80
    %v113 = vpack.c.b16 %v110, %v109
    %v114 = vpack.c.b16 %v112, %v111
    %vm115 = vcmask 130048
    %v117 = vsel %vm115, %v113, 0
    %v120 = vsel %vm115, %v114, 0
    %v123 = vsel %vm115, %v61, 0
    %v126 = vsel %vm115, %v62, 0
    %v129 = vsel %vm115, %v63, 0
    %v132 = vsel %vm115, %v64, 0
    %v135 = vsel %vm115, %v65, 0
    %v138 = vsel %vm115, %v66, 0
    %v141 = vsel %vm115, %v67, 0
    %v144 = vsel %vm115, %v68, 0
    %v147 = vsel %vm115, %v69, 0
    %v150 = vsel %vm115, %v70, 0
    %v153 = vsel %vm115, %v71, 0
    %v156 = vsel %vm115, %v72, 0
    %v159 = vsel %vm115, %v73, 0
    %v162 = vsel %vm115, %v74, 0
    %v165 = vsel %vm115, %v75, 0
    %v168 = vsel %vm115, %v76, 0
    %170 = vmatprep.subr.bf16.mxu0 0
    %171 = vmatpush1.bf16.xpose.msra.mxu0 %v123
    %172 = vmatprep.subr.bf16.mxu0 0
    %173 = vmatpush1.bf16.xpose.msra.mxu0 %v126
    %174 = vmatprep.subr.bf16.mxu0 0
    %175 = vmatpush1.bf16.xpose.msra.mxu0 %v129
    %176 = vmatprep.subr.bf16.mxu0 0
    %177 = vmatpush1.bf16.xpose.msra.mxu0 %v132
    %178 = vmatprep.subr.bf16.mxu0 0
    %179 = vmatpush1.bf16.xpose.msra.mxu0 %v135
    %180 = vmatprep.subr.bf16.mxu0 0
    %181 = vmatpush1.bf16.xpose.msra.mxu0 %v138
    %182 = vmatprep.subr.bf16.mxu0 0
    %183 = vmatpush1.bf16.xpose.msra.mxu0 %v141
    %184 = vmatprep.subr.bf16.mxu0 0
    %185 = vmatpush1.bf16.xpose.msra.mxu0 %v144
    %186 = vmatprep.subr.bf16.mxu0 0
    %187 = vmatpush1.bf16.xpose.msra.mxu0 %v147
    %188 = vmatprep.subr.bf16.mxu0 0
    %189 = vmatpush1.bf16.xpose.msra.mxu0 %v150
    %190 = vmatprep.subr.bf16.mxu0 0
    %191 = vmatpush1.bf16.xpose.msra.mxu0 %v153
    %192 = vmatprep.subr.bf16.mxu0 0
    %193 = vmatpush1.bf16.xpose.msra.mxu0 %v156
    %194 = vmatprep.subr.bf16.mxu0 0
    %195 = vmatpush1.bf16.xpose.msra.mxu0 %v159
    %196 = vmatprep.subr.bf16.mxu0 0
    %197 = vmatpush1.bf16.xpose.msra.mxu0 %v162
    %198 = vmatprep.subr.bf16.mxu0 0
    %199 = vmatpush1.bf16.xpose.msra.mxu0 %v165
    %200 = vmatprep.subr.bf16.mxu0 0
    %201 = vmatpush1.bf16.xpose.msra.mxu0 %v168
    %202 = vmatprep.mubr.bf16.mxu0 0
    %203 = vmatmul.mubr.bf16.gmra.mrb[0].mxu0 %v117
    %v204 = vpop.f32.mrb[0].mxu0
    %v205 = vadd.f32 %v88, %v204
    %v206 = vpop.f32.mrb[0].mxu0
    %v207 = vadd.f32 %v88, %v206
    %v208 = vpop.f32.mrb[0].mxu0
    %v209 = vadd.f32 %v93, %v208
    %v210 = vpop.f32.mrb[0].mxu0
    %v211 = vadd.f32 %v93, %v210
    %212 = vmatprep.mubr.bf16.mxu0 0
    %213 = vmatmul.mubr.bf16.gmra.mrb[0].mxu0 %v120
    %v214 = vpop.f32.mrb[0].mxu0
    %v215 = vadd.f32 %v98, %v214
    %v216 = vpop.f32.mrb[0].mxu0
    %v217 = vadd.f32 %v98, %v216
    %v218 = vpop.f32.mrb[0].mxu0
    %v219 = vadd.f32 %v103, %v218
    %v220 = vpop.f32.mrb[0].mxu0
    %v221 = vadd.f32 %v103, %v220
    %222 = vdwg.mxu0
    %v223 = vmax.f32 %v205, 0.0
    %v224 = vmax.f32 %v207, 0.0
    %v225 = vmax.f32 %v209, 0.0
    %v226 = vmax.f32 %v211, 0.0
    %v227 = vmax.f32 %v215, 0.0
    %v228 = vmax.f32 %v217, 0.0
    %v229 = vmax.f32 %v219, 0.0
    %v230 = vmax.f32 %v221, 0.0
    %v231 = vld [vmem:[%s3] sm:$0xf]
    %v232 = vld [vmem:[%s3 + $0x4] sm:$0xf]
    %v233 = vld [vmem:[%s3 + $0x8] sm:$0xf]
    %v234 = vld [vmem:[%s3 + $0xc] sm:$0xf]
    %v235 = vpack.c.bf16 %v225, %v223
    %v236 = vpack.c.bf16 %v226, %v224
    %v237 = vpack.c.bf16 %v229, %v227
    %v238 = vpack.c.bf16 %v230, %v228
    %v239 = vld [vmem:[%s4] sm:$0xff]
    %v240 = vld [vmem:[%s4 + $0x8] sm:$0xff]
    %v241 = vld [vmem:[%s4 + $0x10] sm:$0xff]
    %v242 = vld [vmem:[%s4 + $0x18] sm:$0xff]
    %244 = vset.pattern.permute.xlu0 0
    %245 = vperm.xlu0 %244, %v239
    %v246 = vpop.permute.xlu0 %245
    %249 = vset.pattern.permute.xlu0 0
    %250 = vperm.xlu0 %249, %v240
    %v251 = vpop.permute.xlu0 %250
    %254 = vset.pattern.permute.xlu0 0
    %255 = vperm.xlu0 %254, %v241
    %v256 = vpop.permute.xlu0 %255
    %259 = vset.pattern.permute.xlu0 0
    %260 = vperm.xlu0 %259, %v242
    %v261 = vpop.permute.xlu0 %260
    %v267 = vunpack.c.l.b16 %v231
    %v268 = vunpack.c.l.b16 %v232
    %v269 = vunpack.c.l.b16 %v233
    %v270 = vunpack.c.l.b16 %v234
    %v271 = vpack.c.b16 %v268, %v267
    %v272 = vpack.c.b16 %v270, %v269
    %vm273 = vcmask 261120
    %v275 = vsel %vm273, %v271, 0
    %v278 = vsel %vm273, %v272, 0
    %280 = vmatprep.subr.bf16.mxu0 %v236
    %281 = vmatpush1.bf16.msra.mxu0 %v235
    %282 = vmatprep.subr.bf16.mxu0 %v238
    %283 = vmatpush1.bf16.msra.mxu0 %v237
    %284 = vmatprep.subr.bf16.mxu0 0
    %285 = vmatpush1.bf16.msra.mxu0 0
    %286 = vmatprep.subr.bf16.mxu0 0
    %287 = vmatpush1.bf16.msra.mxu0 0
    %288 = vmatprep.subr.bf16.mxu0 0
    %289 = vmatpush1.bf16.msra.mxu0 0
    %290 = vmatprep.subr.bf16.mxu0 0
    %291 = vmatpush1.bf16.msra.mxu0 0
    %292 = vmatprep.subr.bf16.mxu0 0
    %293 = vmatpush1.bf16.msra.mxu0 0
    %294 = vmatprep.subr.bf16.mxu0 0
    %295 = vmatpush1.bf16.msra.mxu0 0
    %296 = vmatprep.subr.bf16.mxu0 0
    %297 = vmatpush1.bf16.msra.mxu0 0
    %298 = vmatprep.subr.bf16.mxu0 0
    %299 = vmatpush1.bf16.msra.mxu0 0
    %300 = vmatprep.subr.bf16.mxu0 0
    %301 = vmatpush1.bf16.msra.mxu0 0
    %302 = vmatprep.subr.bf16.mxu0 0
    %303 = vmatpush1.bf16.msra.mxu0 0
    %304 = vmatprep.subr.bf16.mxu0 0
    %305 = vmatpush1.bf16.msra.mxu0 0
    %306 = vmatprep.subr.bf16.mxu0 0
    %307 = vmatpush1.bf16.msra.mxu0 0
    %308 = vmatprep.subr.bf16.mxu0 0
    %309 = vmatpush1.bf16.msra.mxu0 0
    %310 = vmatprep.subr.bf16.mxu0 0
    %311 = vmatpush1.bf16.msra.mxu0 0
    %312 = vmatprep.mubr.bf16.mxu0 0
    %313 = vmatmul.mubr.bf16.gmra.mrb[0].mxu0 %v275
    %v314 = vpop.f32.mrb[0].mxu0
    %v315 = vadd.f32 %v246, %v314
    %v316 = vpop.f32.mrb[0].mxu0
    %v317 = vadd.f32 %v246, %v316
    %v318 = vpop.f32.mrb[0].mxu0
    %v319 = vadd.f32 %v251, %v318
    %v320 = vpop.f32.mrb[0].mxu0
    %v321 = vadd.f32 %v251, %v320
    %322 = vmatprep.mubr.bf16.mxu0 0
    %323 = vmatmul.mubr.bf16.gmra.mrb[0].mxu0 %v278
    %v324 = vpop.f32.mrb[0].mxu0
    %v325 = vadd.f32 %v256, %v324
    %v326 = vpop.f32.mrb[0].mxu0
    %v327 = vadd.f32 %v256, %v326
    %v328 = vpop.f32.mrb[0].mxu0
    %v329 = vadd.f32 %v261, %v328
    %v330 = vpop.f32.mrb[0].mxu0
    %v331 = vadd.f32 %v261, %v330
    %332 = vdwg.mxu0
    %v333 = vmax.f32 %v315, 0.0
    %v334 = vmax.f32 %v317, 0.0
    %v335 = vmax.f32 %v319, 0.0
    %v336 = vmax.f32 %v321, 0.0
    %v337 = vmax.f32 %v325, 0.0
    %v338 = vmax.f32 %v327, 0.0
    %v339 = vmax.f32 %v329, 0.0
    %v340 = vmax.f32 %v331, 0.0
    %v341 = vld [vmem:[%s5] sm:$0x1]
    %v342 = vpack.c.bf16 %v335, %v333
    %v343 = vpack.c.bf16 %v336, %v334
    %v344 = vpack.c.bf16 %v339, %v337
    %v345 = vpack.c.bf16 %v340, %v338
    %s346 = sld [smem:[#allocation2]]
    %v347 = vstv %s346
    %v349 = vsel %vm273, %v341, 0
    %351 = vmatprep.subr.bf16.mxu0 %v343
    %352 = vmatpush1.bf16.msra.mxu0 %v342
    %353 = vmatprep.subr.bf16.mxu0 %v345
    %354 = vmatpush1.bf16.msra.mxu0 %v344
    %355 = vmatprep.subr.bf16.mxu0 0
    %356 = vmatpush1.bf16.msra.mxu0 0
    %357 = vmatprep.subr.bf16.mxu0 0
    %358 = vmatpush1.bf16.msra.mxu0 0
    %359 = vmatprep.subr.bf16.mxu0 0
    %360 = vmatpush1.bf16.msra.mxu0 0
    %361 = vmatprep.subr.bf16.mxu0 0
    %362 = vmatpush1.bf16.msra.mxu0 0
    %363 = vmatprep.subr.bf16.mxu0 0
    %364 = vmatpush1.bf16.msra.mxu0 0
    %365 = vmatprep.subr.bf16.mxu0 0
    %366 = vmatpush1.bf16.msra.mxu0 0
    %367 = vmatprep.subr.bf16.mxu0 0
    %368 = vmatpush1.bf16.msra.mxu0 0
    %369 = vmatprep.subr.bf16.mxu0 0
    %370 = vmatpush1.bf16.msra.mxu0 0
    %371 = vmatprep.subr.bf16.mxu0 0
    %372 = vmatpush1.bf16.msra.mxu0 0
    %373 = vmatprep.subr.bf16.mxu0 0
    %374 = vmatpush1.bf16.msra.mxu0 0
    %375 = vmatprep.subr.bf16.mxu0 0
    %376 = vmatpush1.bf16.msra.mxu0 0
    %377 = vmatprep.subr.bf16.mxu0 0
    %378 = vmatpush1.bf16.msra.mxu0 0
    %379 = vmatprep.subr.bf16.mxu0 0
    %380 = vmatpush1.bf16.msra.mxu0 0
    %381 = vmatprep.subr.bf16.mxu0 0
    %382 = vmatpush1.bf16.msra.mxu0 0
    %383 = vmatprep.mubr.bf16.mxu0 0
    %384 = vmatmul.mubr.bf16.gmra.mrb[0].mxu0 %v349
    %v385 = vpop.f32.mrb[0].mxu0
    %v386 = vadd.f32 %v347, %v385
    %v387 = vpop.f32.mrb[0].mxu0
    %v388 = vadd.f32 %v347, %v387
    %v389 = vpop.f32.mrb[0].mxu0
    %v390 = vpop.f32.mrb[0].mxu0
    %391 = vdwg.mxu0
    %v394 = vcombine.low %v386, %v388
    %v396 = vunpack.c.l.s4 1966171168
    %v397 = vunpack.c.0.s8 %v396
    %v398 = vlaneseq
    %v399 = vshrl.u32 %v398, 7
    %v400 = vsub.s32 %v397, %v399
    %v401 = vrot.slane %v394, %v400
    %v403 = vunpack.c.l.s4 1966171168
    %v404 = vunpack.c.0.s8 %v403
    %v405 = vlaneseq
    %v406 = vshrl.u32 %v405, 7
    %v407 = vsub.s32 %v404, %v406
    %v408 = vrot.slane %v401, %v407
    %v410 = vlaneseq
    %vm411 = vcmp.ge.s32.totalorder %v410, 0
    %vm412 = vcmp.lt.s32.totalorder %v410, 256
    %vm413 = vmand %vm411, %vm412
    %414 = vst.msk [vmem:[#allocation3] sm:$0x3] %vm413, %v408
    // Predicated region
    $region30: #{tpu_custom_call.1} parent=1 // pred_check
      _
    $region31: #{tpu_custom_call.1} parent=1 // pred_check_branch
      %416 = sbr.rel (0) target = $region33
    $region32: #{tpu_custom_call.1} parent=1 // pred_region
      %s418 = ssub.s32 32, 32
      %419 = vsyncadd [#allocation4], %s418
      %s421 = sshll.u32 [#allocation3], 4
      %s422 = int_to_ptr.vmem [resolvable:$true] %s421
      %424 = dma.vmem_to_hbm [thread:$0]  %s422, 32, %s7, [#allocation4]
    $region33: #{tpu_custom_call.1} parent=1 // pred_fallthru
      _
    // Predicated region
    $region34: #{tpu_custom_call.1} parent=1 // pred_check
      _
    $region35: #{tpu_custom_call.1} parent=1 // pred_check_branch
      %426 = sbr.rel (0) target = $region37
    $region36: #{tpu_custom_call.1} parent=1 // pred_region
      %427 = dma.done [#allocation4], 32
    $region37: #{tpu_custom_call.1} parent=1 // pred_fallthru
      _
    %428 = vsyncpa [#allocation4], 1

</llo_original>
